<compile_context>
chip_gen: v7x
topology: tpu7x:2x2x1
jax: 0.10.0
libtpu: 0.0.40
codegen_flags: <defaults>
</compile_context>

<pallas_src>
from functools import partial

import jax
import jax.numpy as jnp
import numpy as np
from jax.experimental import pallas as pl
from jax.experimental.pallas import tpu as pltpu


# --------------------------------- helpers -----------------------------------
def _round_up(n, m):
    return ((n + m - 1) // m) * m


def _pad2(a, rows, cols):
    return jnp.pad(a, ((0, rows - a.shape[0]), (0, cols - a.shape[1])))


# ----------------------------- Pallas kernel ---------------------------------
def _make_mlp_kernel(n_lin, activation):
    """Build an MLP kernel over one batch tile with `n_lin` Linear layers.

    The x tile arrives in its stored dtype (f32) and is cast to the weight
    dtype (bf16) on the VPU right before the first MXU dot.  All dots
    accumulate in f32; bias add and the activation stay in f32.
    """
    if activation == "TANH":
        act = jnp.tanh
    else:  # 'RELU'
        act = lambda v: jnp.maximum(v, 0.0)

    def kernel(*refs):
        x_ref = refs[0]
        o_ref = refs[1 + 2 * n_lin]
        h = x_ref[...]
        for li in range(n_lin):
            w_ref = refs[1 + 2 * li]
            b_ref = refs[2 + 2 * li]
            h = jnp.dot(h.astype(w_ref.dtype), w_ref[...],
                        preferred_element_type=jnp.float32)
            h = h + b_ref[...]                      # f32 bias add
            if li < n_lin - 1:
                h = act(h)                          # activation between layers
        o_ref[...] = h.astype(o_ref.dtype)

    return kernel


# --------------------------- one-time param prep ------------------------------
def prepare_params(params, compute_dtype=jnp.bfloat16):
    """Pad feature dims to multiples of 128 lanes and cast weights ONCE.

    Call this at init and keep the returned pytree; forward calls never touch
    the raw parameters again.  bf16 operands are a deliberate deviation from
    the f32 PyTorch module (full-rate MXU, half the weight bytes); pass
    compute_dtype=jnp.float32 for exact module semantics.
    """
    padded = []
    for w, b in params:
        fi, fo = w.shape
        fi_p, fo_p = _round_up(fi, 128), _round_up(fo, 128)
        wp = _pad2(jnp.asarray(w), fi_p, fo_p).astype(compute_dtype)
        bp = _pad2(jnp.asarray(b).reshape(1, -1), 1, fo_p).astype(jnp.float32)
        padded.append((wp, bp))
    return tuple(padded)


# --------------------------------- forward ------------------------------------
@partial(jax.jit, static_argnames=("out_class", "block_b", "activation"))
def mlp_forward(x, padded_params, *, out_class, block_b=512, activation="TANH"):
    """MLP forward with a batch-tiled Pallas kernel.

    `padded_params` must come from prepare_params().  The output is sliced back
    to (B, out_class); under jit the slice fuses with the consumer.
    """
    n_lin = len(padded_params)
    B, in_feat = x.shape
    in_p = padded_params[0][0].shape[0]
    out_p = padded_params[-1][0].shape[1]

    # Batch tile: >= 2 grid steps when the batch allows (both v7x TCs via
    # "parallel" semantics), 16-aligned (bf16 sublane packing), capped at
    # block_b.  f32 x tile + f32 out tile at bb=512, in_p<=1024 is ~5 MiB
    # double-buffered -- well under the default scoped VMEM limit everywhere.
    bb = min(block_b, max(16, _round_up(-(-B // 2), 16)))
    B_p = _round_up(B, bb)
    grid = (B_p // bb,)

    # x stays f32 (cast in-kernel); only pad when the shape actually requires it.
    if B_p != B or in_p != in_feat:
        x = jnp.pad(x, ((0, B_p - B), (0, in_p - in_feat)))

    flat_params = [a for wb in padded_params for a in wb]

    # Constant index_map -> weights/biases stay VMEM-resident across grid steps;
    # single-buffered since the block never changes.
    def resident(a):
        return pl.BlockSpec(a.shape, lambda i: (0, 0),
                            pipeline_mode=pl.Buffered(1))

    dims = [in_p] + [wp.shape[1] for wp, _ in padded_params]
    flops = 2 * B_p * sum(dims[i] * dims[i + 1] for i in range(n_lin))
    transc = B_p * sum(dims[1:-1]) if activation == "TANH" else 0
    w_bytes = sum(int(a.size) * a.dtype.itemsize for a in flat_params)
    cost = pl.CostEstimate(
        flops=flops,
        transcendentals=transc,
        bytes_accessed=int(B_p) * in_p * x.dtype.itemsize   # x read
                       + int(B_p) * out_p * 4                # out write
                       + w_bytes,                            # weights read
    )

    out = pl.pallas_call(
        _make_mlp_kernel(n_lin, activation),
        out_shape=jax.ShapeDtypeStruct((B_p, out_p), jnp.float32),
        grid_spec=pltpu.PrefetchScalarGridSpec(
            num_scalar_prefetch=0,
            grid=grid,
            in_specs=[pl.BlockSpec((bb, in_p), lambda i: (i, 0))]   # x batch tile
                     + [resident(a) for a in flat_params],
            out_specs=pl.BlockSpec((bb, out_p), lambda i: (i, 0)),
        ),
        compiler_params=pltpu.CompilerParams(
            dimension_semantics=("parallel",)),
        cost_estimate=cost,
    )(x, *flat_params)

    # Padded rows/cols (garbage rows, zero cols) are dropped here; under jit the
    # slice fuses with the consumer instead of a standalone HBM pass.
    return out[:B, :out_class]


# ------------------------- deterministic parameters ---------------------------
def init_linear(key, fan_in, fan_out, dtype=jnp.float32):
    """Mimic torch.nn.Linear default init: U(-1/sqrt(fan_in), 1/sqrt(fan_in))."""
    kw, kb = jax.random.split(key)
    bound = 1.0 / np.sqrt(fan_in)
    # stored as (in, out) so the kernel computes x @ W
    w = jax.random.uniform(kw, (fan_in, fan_out), dtype, -bound, bound)
    b = jax.random.uniform(kb, (1, fan_out), dtype, -bound, bound)
    return w, b


def make_params(key, in_feat, num_lin_lrs, out_class):
    params = []
    nprev = in_feat
    keys = jax.random.split(key, len(num_lin_lrs) + 1)
    for k, nh in zip(keys[:-1], num_lin_lrs):
        params.append(init_linear(k, nprev, nh))
        nprev = nh
    params.append(init_linear(keys[-1], nprev, out_class))
    return params


# --------------------------------- references ---------------------------------
def mlp_reference_f32(x, params):
    h = x
    for i, (w, b) in enumerate(params):
        h = h @ w + b
        if i < len(params) - 1:
            h = jnp.tanh(h)
    return h


def mlp_reference_bf16(x, params, compute_dtype=jnp.bfloat16):
    """Reference that applies the same bf16 operand quantization as the kernel."""
    h = x
    for i, (w, b) in enumerate(params):
        h = jnp.dot(h.astype(compute_dtype), w.astype(compute_dtype),
                    preferred_element_type=jnp.float32) + b
        if i < len(params) - 1:
            h = jnp.tanh(h)
    return h


# ----------------------------------- demo -------------------------------------
if __name__ == "__main__":
    # Small shapes consistent with the module (scaled down from in_feat=1024):
    # EmailPartDetectorLinearModel(in_feat=128, out_class=27,
    #                              num_lin_lrs=[64, 32], activation='TANH',
    #                              dropout=0.0)  -- eval mode, dropout is identity.
    B, IN_FEAT, OUT_CLASS = 16, 128, 27
    NUM_LIN_LRS = [64, 32]

    key = jax.random.PRNGKey(0)
    kx, kp = jax.random.split(key)
    x = jax.random.normal(kx, (B, IN_FEAT), dtype=jnp.float32)
    params = make_params(kp, IN_FEAT, NUM_LIN_LRS, OUT_CLASS)

    # One-time pad + cast (hoisted out of the per-call path).
    padded_params = prepare_params(params)

    out = jax.block_until_ready(
        mlp_forward(x, padded_params, out_class=OUT_CLASS))
    assert out.shape == (B, OUT_CLASS)

    # Exact-math check against a reference with identical bf16 operand casts.
    ref_q = jax.block_until_ready(mlp_reference_bf16(x, params))
    np.testing.assert_allclose(np.asarray(out), np.asarray(ref_q),
                               rtol=1e-4, atol=1e-4)

    # Sanity check against the original full-f32 module semantics.
    ref = jax.block_until_ready(mlp_reference_f32(x, params))
    np.testing.assert_allclose(np.asarray(out), np.asarray(ref),
                               rtol=5e-2, atol=5e-2)

    print("KERNEL_OK")
</pallas_src>

<mosaic_0001>
module attributes {stable_mosaic.version = 11 : i64} {
  func.func @kernel(%arg0: i32, %arg1: memref<16x128xf32, #tpu.memory_space<vmem>>, %arg2: memref<128x128xbf16, #tpu.memory_space<vmem>>, %arg3: memref<1x128xf32, #tpu.memory_space<vmem>>, %arg4: memref<128x128xbf16, #tpu.memory_space<vmem>>, %arg5: memref<1x128xf32, #tpu.memory_space<vmem>>, %arg6: memref<128x128xbf16, #tpu.memory_space<vmem>>, %arg7: memref<1x128xf32, #tpu.memory_space<vmem>>, %arg8: memref<16x128xf32, #tpu.memory_space<vmem>>) attributes {dimension_semantics = [#tpu.dimension_semantics<parallel>], iteration_bounds = array<i64: 1>, scalar_prefetch = 0 : i64, scratch_operands = 0 : i64, tpu.core_type = #tpu.core_type<tc>, window_params = [{transform_indices = @transform_0, window_bounds = array<i64: 16, 128>}, {pipeline_mode = #tpu.pipeline_mode<synchronous>, transform_indices = @transform_1, window_bounds = array<i64: 128, 128>}, {pipeline_mode = #tpu.pipeline_mode<synchronous>, transform_indices = @transform_2, window_bounds = array<i64: 1, 128>}, {pipeline_mode = #tpu.pipeline_mode<synchronous>, transform_indices = @transform_3, window_bounds = array<i64: 128, 128>}, {pipeline_mode = #tpu.pipeline_mode<synchronous>, transform_indices = @transform_4, window_bounds = array<i64: 1, 128>}, {pipeline_mode = #tpu.pipeline_mode<synchronous>, transform_indices = @transform_5, window_bounds = array<i64: 128, 128>}, {pipeline_mode = #tpu.pipeline_mode<synchronous>, transform_indices = @transform_6, window_bounds = array<i64: 1, 128>}, {transform_indices = @transform_7, window_bounds = array<i64: 16, 128>}]} {
    %c0 = arith.constant 0 : index
    %c0_0 = arith.constant 0 : index
    %0 = vector.load %arg1[%c0, %c0_0] : memref<16x128xf32, #tpu.memory_space<vmem>>, vector<16x128xf32>
    %1 = arith.truncf %0 : vector<16x128xf32> to vector<16x128xbf16>
    %c0_1 = arith.constant 0 : index
    %c0_2 = arith.constant 0 : index
    %2 = vector.load %arg2[%c0_1, %c0_2] : memref<128x128xbf16, #tpu.memory_space<vmem>>, vector<128x128xbf16>
    %cst = arith.constant dense<0.000000e+00> : vector<16x128xf32>
    %3 = tpu.matmul %1, %2, %cst {dimension_numbers = #tpu.dot_dimension_numbers<[1], [0], [0], [1], [0, 0, 1, 1], [], []>} : vector<16x128xbf16>, vector<128x128xbf16>, vector<16x128xf32> -> vector<16x128xf32>
    %c0_3 = arith.constant 0 : index
    %c0_4 = arith.constant 0 : index
    %4 = vector.load %arg3[%c0_3, %c0_4] : memref<1x128xf32, #tpu.memory_space<vmem>>, vector<1x128xf32>
    %5 = vector.broadcast %4 : vector<1x128xf32> to vector<16x128xf32>
    %6 = arith.addf %3, %5 : vector<16x128xf32>
    %7 = math.tanh %6 : vector<16x128xf32>
    %8 = arith.truncf %7 : vector<16x128xf32> to vector<16x128xbf16>
    %c0_5 = arith.constant 0 : index
    %c0_6 = arith.constant 0 : index
    %9 = vector.load %arg4[%c0_5, %c0_6] : memref<128x128xbf16, #tpu.memory_space<vmem>>, vector<128x128xbf16>
    %cst_7 = arith.constant dense<0.000000e+00> : vector<16x128xf32>
    %10 = tpu.matmul %8, %9, %cst_7 {dimension_numbers = #tpu.dot_dimension_numbers<[1], [0], [0], [1], [0, 0, 1, 1], [], []>} : vector<16x128xbf16>, vector<128x128xbf16>, vector<16x128xf32> -> vector<16x128xf32>
    %c0_8 = arith.constant 0 : index
    %c0_9 = arith.constant 0 : index
    %11 = vector.load %arg5[%c0_8, %c0_9] : memref<1x128xf32, #tpu.memory_space<vmem>>, vector<1x128xf32>
    %12 = vector.broadcast %11 : vector<1x128xf32> to vector<16x128xf32>
    %13 = arith.addf %10, %12 : vector<16x128xf32>
    %14 = math.tanh %13 : vector<16x128xf32>
    %15 = arith.truncf %14 : vector<16x128xf32> to vector<16x128xbf16>
    %c0_10 = arith.constant 0 : index
    %c0_11 = arith.constant 0 : index
    %16 = vector.load %arg6[%c0_10, %c0_11] : memref<128x128xbf16, #tpu.memory_space<vmem>>, vector<128x128xbf16>
    %cst_12 = arith.constant dense<0.000000e+00> : vector<16x128xf32>
    %17 = tpu.matmul %15, %16, %cst_12 {dimension_numbers = #tpu.dot_dimension_numbers<[1], [0], [0], [1], [0, 0, 1, 1], [], []>} : vector<16x128xbf16>, vector<128x128xbf16>, vector<16x128xf32> -> vector<16x128xf32>
    %c0_13 = arith.constant 0 : index
    %c0_14 = arith.constant 0 : index
    %18 = vector.load %arg7[%c0_13, %c0_14] : memref<1x128xf32, #tpu.memory_space<vmem>>, vector<1x128xf32>
    %19 = vector.broadcast %18 : vector<1x128xf32> to vector<16x128xf32>
    %20 = arith.addf %17, %19 : vector<16x128xf32>
    %c0_15 = arith.constant 0 : index
    %c0_16 = arith.constant 0 : index
    %21 = vector.load %arg8[%c0_15, %c0_16] : memref<16x128xf32, #tpu.memory_space<vmem>>, vector<16x128xf32>
    tpu.vector_store %arg8[%c0_15, %c0_16], %20 {strides = array<i32>} : memref<16x128xf32, #tpu.memory_space<vmem>>, vector<16x128xf32>,
    return
  }
  func.func @transform_0(%arg0: i32) -> (i32, i32) {
    %c0_i32 = arith.constant 0 : i32
    %c0_i32_0 = arith.constant 0 : i32
    return %arg0, %c0_i32 : i32, i32
  }
  func.func @transform_1(%arg0: i32) -> (i32, i32) {
    %c0_i32 = arith.constant 0 : i32
    %c0_i32_0 = arith.constant 0 : i32
    %c0_i32_1 = arith.constant 0 : i32
    return %c0_i32, %c0_i32_0 : i32, i32
  }
  func.func @transform_2(%arg0: i32) -> (i32, i32) {
    %c0_i32 = arith.constant 0 : i32
    %c0_i32_0 = arith.constant 0 : i32
    %c0_i32_1 = arith.constant 0 : i32
    return %c0_i32, %c0_i32_0 : i32, i32
  }
  func.func @transform_3(%arg0: i32) -> (i32, i32) {
    %c0_i32 = arith.constant 0 : i32
    %c0_i32_0 = arith.constant 0 : i32
    %c0_i32_1 = arith.constant 0 : i32
    return %c0_i32, %c0_i32_0 : i32, i32
  }
  func.func @transform_4(%arg0: i32) -> (i32, i32) {
    %c0_i32 = arith.constant 0 : i32
    %c0_i32_0 = arith.constant 0 : i32
    %c0_i32_1 = arith.constant 0 : i32
    return %c0_i32, %c0_i32_0 : i32, i32
  }
  func.func @transform_5(%arg0: i32) -> (i32, i32) {
    %c0_i32 = arith.constant 0 : i32
    %c0_i32_0 = arith.constant 0 : i32
    %c0_i32_1 = arith.constant 0 : i32
    return %c0_i32, %c0_i32_0 : i32, i32
  }
  func.func @transform_6(%arg0: i32) -> (i32, i32) {
    %c0_i32 = arith.constant 0 : i32
    %c0_i32_0 = arith.constant 0 : i32
    %c0_i32_1 = arith.constant 0 : i32
    return %c0_i32, %c0_i32_0 : i32, i32
  }
  func.func @transform_7(%arg0: i32) -> (i32, i32) {
    %c0_i32 = arith.constant 0 : i32
    %c0_i32_0 = arith.constant 0 : i32
    return %arg0, %c0_i32 : i32, i32
  }
}

</mosaic_0001>

<llo_original>
// kernel: mlp_forward.1
$region0: #{mlp_forward.1}
  #allocation0 [shape = 'u32[]', space=smem, size = 0x4, offset = 0x4, fixed_abs, tag = 'smem constant byte address 0x4 - core index']
  #allocation1 [shape = 'u32[144,128]{1,0:T(1,128)}', space=vmem, size = 0x12000, scoped, tag = 'internal scratch']
  %s0 = inlined_call_operand.hbm [shape: f32[16,128], index: 0, kind: input, shape index: {}]
  %s1 = inlined_call_operand.hbm [shape: bf16[128,128], index: 1, kind: input, shape index: {}]
  %s2 = inlined_call_operand.vmem [shape: f32[1,128], index: 2, kind: input, shape index: {}]
  %s3 = inlined_call_operand.hbm [shape: bf16[128,128], index: 3, kind: input, shape index: {}]
  %s4 = inlined_call_operand.vmem [shape: f32[1,128], index: 4, kind: input, shape index: {}]
  %s5 = inlined_call_operand.hbm [shape: bf16[128,128], index: 5, kind: input, shape index: {}]
  %s6 = inlined_call_operand.vmem [shape: f32[1,128], index: 6, kind: input, shape index: {}]
  %s7 = inlined_call_operand.hbm [shape: f32[16,128], index: 7, kind: output, shape index: {}]
  %s8 = sld [smem:[#allocation0]]
  $region54: #{mlp_forward.1} parent=0
    _
  %s10 = ssub.s32 1, %s8
  %s11 = scalar_select 0, %s10, %s8
  $region1: #{mlp_forward.1} parent=0
    #allocation2 [shape = 'u8[8192]{0}', space=vmem, size = 0x2000, scoped, tag = 'input window, operand 0, single buffered']
    #allocation3 [shape = 's32[1]{0}', space=sflag, size = 0x4, scoped, tag = 'scoped memory for mlp_forward.1']
    #allocation4 [shape = 's32[1]{0}', space=sflag, size = 0x4, scoped, tag = 'scoped memory for mlp_forward.1']
    #allocation5 [shape = 'u8[32768]{0}', space=vmem, size = 0x8000, scoped, tag = 'input window, operand 1, single buffered']
    #allocation6 [shape = 's32[1]{0}', space=sflag, size = 0x4, scoped, tag = 'scoped memory for mlp_forward.1']
    #allocation7 [shape = 'u8[32768]{0}', space=vmem, size = 0x8000, scoped, tag = 'input window, operand 3, single buffered']
    #allocation8 [shape = 'u8[32768]{0}', space=vmem, size = 0x8000, scoped, tag = 'input window, operand 5, single buffered']
    #allocation9 [shape = 's32[1]{0}', space=sflag, size = 0x4, scoped, tag = 'scoped memory for mlp_forward.1']
    #allocation10 [shape = 'u8[8192]{0}', space=vmem, size = 0x2000, scoped, tag = 'output window, operand 0, single buffered']
    %12 = vsyncpa [#allocation3], 0
    %13 = vsyncpa [#allocation6], 0
    %14 = vsyncpa [#allocation9], 0
    %15 = vsyncpa [#allocation4], 0
    // Predicated region
    $region2: #{mlp_forward.1} parent=1 // pred_check
      _
    $region3: #{mlp_forward.1} parent=1 // pred_check_branch
      %17 = sbr.rel (0) target = $region5
    $region4: #{mlp_forward.1} parent=1 // pred_region
      %s19 = ssub.s32 256, 256
      %20 = vsyncadd [#allocation3], %s19
      %s21 = sshll.u32 [#allocation2], 4
      %s22 = int_to_ptr.vmem [resolvable:$true] %s21
      %27 = dma.hbm_to_vmem [thread:$0]  %s0, 256, %s22, [#allocation3], 128, 128, 8
    $region5: #{mlp_forward.1} parent=1 // pred_fallthru
      _
    // Predicated region
    $region6: #{mlp_forward.1} parent=1 // pred_check
      _
    $region7: #{mlp_forward.1} parent=1 // pred_check_branch
      %29 = sbr.rel (0) target = $region9
    $region8: #{mlp_forward.1} parent=1 // pred_region
      %s31 = ssub.s32 1024, 1024
      %32 = vsyncadd [#allocation6], %s31
      %s33 = sshll.u32 [#allocation5], 4
      %s34 = int_to_ptr.vmem [resolvable:$true] %s33
      %39 = dma.hbm_to_vmem [thread:$0]  %s1, 1024, %s34, [#allocation6], 64, 64, 4
    $region9: #{mlp_forward.1} parent=1 // pred_fallthru
      _
    // Predicated region
    $region10: #{mlp_forward.1} parent=1 // pred_check
      _
    $region11: #{mlp_forward.1} parent=1 // pred_check_branch
      %41 = sbr.rel (0) target = $region13
    $region12: #{mlp_forward.1} parent=1 // pred_region
      _
    $region13: #{mlp_forward.1} parent=1 // pred_fallthru
      _
    // Predicated region
    $region14: #{mlp_forward.1} parent=1 // pred_check
      _
    $region15: #{mlp_forward.1} parent=1 // pred_check_branch
      %43 = sbr.rel (0) target = $region17
    $region16: #{mlp_forward.1} parent=1 // pred_region
      %s45 = ssub.s32 1024, 1024
      %46 = vsyncadd [#allocation6], %s45
      %s47 = sshll.u32 [#allocation7], 4
      %s48 = int_to_ptr.vmem [resolvable:$true] %s47
      %53 = dma.hbm_to_vmem [thread:$0]  %s3, 1024, %s48, [#allocation6], 64, 64, 4
    $region17: #{mlp_forward.1} parent=1 // pred_fallthru
      _
    // Predicated region
    $region18: #{mlp_forward.1} parent=1 // pred_check
      _
    $region19: #{mlp_forward.1} parent=1 // pred_check_branch
      %55 = sbr.rel (0) target = $region21
    $region20: #{mlp_forward.1} parent=1 // pred_region
      _
    $region21: #{mlp_forward.1} parent=1 // pred_fallthru
      _
    // Predicated region
    $region22: #{mlp_forward.1} parent=1 // pred_check
      _
    $region23: #{mlp_forward.1} parent=1 // pred_check_branch
      %57 = sbr.rel (0) target = $region25
    $region24: #{mlp_forward.1} parent=1 // pred_region
      %s59 = ssub.s32 1024, 1024
      %60 = vsyncadd [#allocation9], %s59
      %s61 = sshll.u32 [#allocation8], 4
      %s62 = int_to_ptr.vmem [resolvable:$true] %s61
      %67 = dma.hbm_to_vmem [thread:$0]  %s5, 1024, %s62, [#allocation9], 64, 64, 4
    $region25: #{mlp_forward.1} parent=1 // pred_fallthru
      _
    // Predicated region
    $region26: #{mlp_forward.1} parent=1 // pred_check
      _
    $region27: #{mlp_forward.1} parent=1 // pred_check_branch
      %69 = sbr.rel (0) target = $region29
    $region28: #{mlp_forward.1} parent=1 // pred_region
      _
    $region29: #{mlp_forward.1} parent=1 // pred_fallthru
      _
    // Predicated region
    $region30: #{mlp_forward.1} parent=1 // pred_check
      _
    $region31: #{mlp_forward.1} parent=1 // pred_check_branch
      %71 = sbr.rel (0) target = $region33
    $region32: #{mlp_forward.1} parent=1 // pred_region
      %72 = dma.done [#allocation3], 256
    $region33: #{mlp_forward.1} parent=1 // pred_fallthru
      _
    // Predicated region
    $region34: #{mlp_forward.1} parent=1 // pred_check
      _
    $region35: #{mlp_forward.1} parent=1 // pred_check_branch
      %74 = sbr.rel (0) target = $region37
    $region36: #{mlp_forward.1} parent=1 // pred_region
      %75 = dma.done [#allocation6], 1024
    $region37: #{mlp_forward.1} parent=1 // pred_fallthru
      _
    // Predicated region
    $region38: #{mlp_forward.1} parent=1 // pred_check
      _
    $region39: #{mlp_forward.1} parent=1 // pred_check_branch
      %77 = sbr.rel (0) target = $region41
    $region40: #{mlp_forward.1} parent=1 // pred_region
      %78 = dma.done [#allocation6], 1024
    $region41: #{mlp_forward.1} parent=1 // pred_fallthru
      _
    // Predicated region
    $region42: #{mlp_forward.1} parent=1 // pred_check
      _
    $region43: #{mlp_forward.1} parent=1 // pred_check_branch
      %80 = sbr.rel (0) target = $region45
    $region44: #{mlp_forward.1} parent=1 // pred_region
      %81 = dma.done [#allocation9], 1024
    $region45: #{mlp_forward.1} parent=1 // pred_fallthru
      _
    %v83 = vld [vmem:[#allocation2] sm:$0xff]
    %v84 = vld [vmem:[#allocation2 + $0x8] sm:$0xff]
    %v85 = vpack.c.bf16 %v84, %v83
    %v86 = vld [vmem:[#allocation5] sm:$0xf]
    %v87 = vld [vmem:[#allocation5 + $0x4] sm:$0xf]
    %v88 = vld [vmem:[#allocation5 + $0x8] sm:$0xf]
    %v89 = vld [vmem:[#allocation5 + $0xc] sm:$0xf]
    %v90 = vld [vmem:[#allocation5 + $0x10] sm:$0xf]
    %v91 = vld [vmem:[#allocation5 + $0x14] sm:$0xf]
    %v92 = vld [vmem:[#allocation5 + $0x18] sm:$0xf]
    %v93 = vld [vmem:[#allocation5 + $0x1c] sm:$0xf]
    %v94 = vld [vmem:[#allocation5 + $0x20] sm:$0xf]
    %v95 = vld [vmem:[#allocation5 + $0x24] sm:$0xf]
    %v96 = vld [vmem:[#allocation5 + $0x28] sm:$0xf]
    %v97 = vld [vmem:[#allocation5 + $0x2c] sm:$0xf]
    %v98 = vld [vmem:[#allocation5 + $0x30] sm:$0xf]
    %v99 = vld [vmem:[#allocation5 + $0x34] sm:$0xf]
    %v100 = vld [vmem:[#allocation5 + $0x38] sm:$0xf]
    %v101 = vld [vmem:[#allocation5 + $0x3c] sm:$0xf]
    %v102 = vld [vmem:[%s2] sm:$0x1]
    %v104 = vlaneseq
    %v105 = vshrl.u32 %v104, 7
    %v106 = vsub.s32 0, %v105
    %v107 = vrot.slane %v102, %v106
    %v125 = vunpack.c.l.b16 %v86
    %v126 = vunpack.c.l.b16 %v87
    %v127 = vunpack.c.l.b16 %v88
    %v128 = vunpack.c.l.b16 %v89
    %v129 = vunpack.c.l.b16 %v90
    %v130 = vunpack.c.l.b16 %v91
    %v131 = vunpack.c.l.b16 %v92
    %v132 = vunpack.c.l.b16 %v93
    %v133 = vunpack.c.l.b16 %v94
    %v134 = vunpack.c.l.b16 %v95
    %v135 = vunpack.c.l.b16 %v96
    %v136 = vunpack.c.l.b16 %v97
    %v137 = vunpack.c.l.b16 %v98
    %v138 = vunpack.c.l.b16 %v99
    %v139 = vunpack.c.l.b16 %v100
    %v140 = vunpack.c.l.b16 %v101
    %v141 = vpack.c.b16 %v126, %v125
    %v142 = vpack.c.b16 %v128, %v127
    %v143 = vpack.c.b16 %v130, %v129
    %v144 = vpack.c.b16 %v132, %v131
    %v145 = vpack.c.b16 %v134, %v133
    %v146 = vpack.c.b16 %v136, %v135
    %v147 = vpack.c.b16 %v138, %v137
    %v148 = vpack.c.b16 %v140, %v139
    %157 = vmatprep.subr.bf16.mxu0 0
    %158 = vmatpush1.bf16.msra.mxu0 %v141
    %159 = vmatprep.subr.bf16.mxu0 0
    %160 = vmatpush1.bf16.msra.mxu0 %v142
    %161 = vmatprep.subr.bf16.mxu0 0
    %162 = vmatpush1.bf16.msra.mxu0 %v143
    %163 = vmatprep.subr.bf16.mxu0 0
    %164 = vmatpush1.bf16.msra.mxu0 %v144
    %165 = vmatprep.subr.bf16.mxu0 0
    %166 = vmatpush1.bf16.msra.mxu0 %v145
    %167 = vmatprep.subr.bf16.mxu0 0
    %168 = vmatpush1.bf16.msra.mxu0 %v146
    %169 = vmatprep.subr.bf16.mxu0 0
    %170 = vmatpush1.bf16.msra.mxu0 %v147
    %171 = vmatprep.subr.bf16.mxu0 0
    %172 = vmatpush1.bf16.msra.mxu0 %v148
    %173 = vmatprep.subr.bf16.mxu0 0
    %174 = vmatpush1.bf16.msra.mxu0 0
    %175 = vmatprep.subr.bf16.mxu0 0
    %176 = vmatpush1.bf16.msra.mxu0 0
    %177 = vmatprep.subr.bf16.mxu0 0
    %178 = vmatpush1.bf16.msra.mxu0 0
    %179 = vmatprep.subr.bf16.mxu0 0
    %180 = vmatpush1.bf16.msra.mxu0 0
    %181 = vmatprep.subr.bf16.mxu0 0
    %182 = vmatpush1.bf16.msra.mxu0 0
    %183 = vmatprep.subr.bf16.mxu0 0
    %184 = vmatpush1.bf16.msra.mxu0 0
    %185 = vmatprep.subr.bf16.mxu0 0
    %186 = vmatpush1.bf16.msra.mxu0 0
    %187 = vmatprep.subr.bf16.mxu0 0
    %188 = vmatpush1.bf16.msra.mxu0 0
    %189 = vmatprep.mubr.bf16.mxu0 0
    %190 = vmatmul.mubr.bf16.gmra.mrb[0].mxu0 %v85
    %v191 = vpop.f32.mrb[0].mxu0
    %v192 = vadd.f32 %v107, %v191
    %v193 = vpop.f32.mrb[0].mxu0
    %v194 = vpop.f32.mrb[0].mxu0
    %v195 = vadd.f32 %v107, %v194
    %v196 = vpop.f32.mrb[0].mxu0
    %197 = vdwg.mxu0
    %v198 = vtanh.pop %v192
    %v199 = vtanh.pop %v195
    %v200 = vpack.c.bf16 %v199, %v198
    %v201 = vld [vmem:[#allocation7] sm:$0xf]
    %v202 = vld [vmem:[#allocation7 + $0x4] sm:$0xf]
    %v203 = vld [vmem:[#allocation7 + $0x8] sm:$0xf]
    %v204 = vld [vmem:[#allocation7 + $0xc] sm:$0xf]
    %v205 = vld [vmem:[#allocation7 + $0x10] sm:$0xf]
    %v206 = vld [vmem:[#allocation7 + $0x14] sm:$0xf]
    %v207 = vld [vmem:[#allocation7 + $0x18] sm:$0xf]
    %v208 = vld [vmem:[#allocation7 + $0x1c] sm:$0xf]
    %v209 = vld [vmem:[#allocation7 + $0x20] sm:$0xf]
    %v210 = vld [vmem:[#allocation7 + $0x24] sm:$0xf]
    %v211 = vld [vmem:[#allocation7 + $0x28] sm:$0xf]
    %v212 = vld [vmem:[#allocation7 + $0x2c] sm:$0xf]
    %v213 = vld [vmem:[#allocation7 + $0x30] sm:$0xf]
    %v214 = vld [vmem:[#allocation7 + $0x34] sm:$0xf]
    %v215 = vld [vmem:[#allocation7 + $0x38] sm:$0xf]
    %v216 = vld [vmem:[#allocation7 + $0x3c] sm:$0xf]
    %v217 = vld [vmem:[%s4] sm:$0x1]
    %v219 = vlaneseq
    %v220 = vshrl.u32 %v219, 7
    %v221 = vsub.s32 0, %v220
    %v222 = vrot.slane %v217, %v221
    %v240 = vunpack.c.l.b16 %v201
    %v241 = vunpack.c.l.b16 %v202
    %v242 = vunpack.c.l.b16 %v203
    %v243 = vunpack.c.l.b16 %v204
    %v244 = vunpack.c.l.b16 %v205
    %v245 = vunpack.c.l.b16 %v206
    %v246 = vunpack.c.l.b16 %v207
    %v247 = vunpack.c.l.b16 %v208
    %v248 = vunpack.c.l.b16 %v209
    %v249 = vunpack.c.l.b16 %v210
    %v250 = vunpack.c.l.b16 %v211
    %v251 = vunpack.c.l.b16 %v212
    %v252 = vunpack.c.l.b16 %v213
    %v253 = vunpack.c.l.b16 %v214
    %v254 = vunpack.c.l.b16 %v215
    %v255 = vunpack.c.l.b16 %v216
    %v256 = vpack.c.b16 %v241, %v240
    %v257 = vpack.c.b16 %v243, %v242
    %v258 = vpack.c.b16 %v245, %v244
    %v259 = vpack.c.b16 %v247, %v246
    %v260 = vpack.c.b16 %v249, %v248
    %v261 = vpack.c.b16 %v251, %v250
    %v262 = vpack.c.b16 %v253, %v252
    %v263 = vpack.c.b16 %v255, %v254
    %272 = vmatprep.subr.bf16.mxu0 0
    %273 = vmatpush1.bf16.msra.mxu0 %v256
    %274 = vmatprep.subr.bf16.mxu0 0
    %275 = vmatpush1.bf16.msra.mxu0 %v257
    %276 = vmatprep.subr.bf16.mxu0 0
    %277 = vmatpush1.bf16.msra.mxu0 %v258
    %278 = vmatprep.subr.bf16.mxu0 0
    %279 = vmatpush1.bf16.msra.mxu0 %v259
    %280 = vmatprep.subr.bf16.mxu0 0
    %281 = vmatpush1.bf16.msra.mxu0 %v260
    %282 = vmatprep.subr.bf16.mxu0 0
    %283 = vmatpush1.bf16.msra.mxu0 %v261
    %284 = vmatprep.subr.bf16.mxu0 0
    %285 = vmatpush1.bf16.msra.mxu0 %v262
    %286 = vmatprep.subr.bf16.mxu0 0
    %287 = vmatpush1.bf16.msra.mxu0 %v263
    %288 = vmatprep.subr.bf16.mxu0 0
    %289 = vmatpush1.bf16.msra.mxu0 0
    %290 = vmatprep.subr.bf16.mxu0 0
    %291 = vmatpush1.bf16.msra.mxu0 0
    %292 = vmatprep.subr.bf16.mxu0 0
    %293 = vmatpush1.bf16.msra.mxu0 0
    %294 = vmatprep.subr.bf16.mxu0 0
    %295 = vmatpush1.bf16.msra.mxu0 0
    %296 = vmatprep.subr.bf16.mxu0 0
    %297 = vmatpush1.bf16.msra.mxu0 0
    %298 = vmatprep.subr.bf16.mxu0 0
    %299 = vmatpush1.bf16.msra.mxu0 0
    %300 = vmatprep.subr.bf16.mxu0 0
    %301 = vmatpush1.bf16.msra.mxu0 0
    %302 = vmatprep.subr.bf16.mxu0 0
    %303 = vmatpush1.bf16.msra.mxu0 0
    %304 = vmatprep.mubr.bf16.mxu0 0
    %305 = vmatmul.mubr.bf16.gmra.mrb[0].mxu0 %v200
    %v306 = vpop.f32.mrb[0].mxu0
    %v307 = vadd.f32 %v222, %v306
    %v308 = vpop.f32.mrb[0].mxu0
    %v309 = vpop.f32.mrb[0].mxu0
    %v310 = vadd.f32 %v222, %v309
    %v311 = vpop.f32.mrb[0].mxu0
    %312 = vdwg.mxu0
    %v313 = vtanh.pop %v307
    %v314 = vtanh.pop %v310
    %v315 = vpack.c.bf16 %v314, %v313
    %v316 = vld [vmem:[#allocation8] sm:$0xf]
    %v317 = vld [vmem:[#allocation8 + $0x4] sm:$0xf]
    %v318 = vld [vmem:[#allocation8 + $0x8] sm:$0xf]
    %v319 = vld [vmem:[#allocation8 + $0xc] sm:$0xf]
    %v320 = vld [vmem:[#allocation8 + $0x10] sm:$0xf]
    %v321 = vld [vmem:[#allocation8 + $0x14] sm:$0xf]
    %v322 = vld [vmem:[#allocation8 + $0x18] sm:$0xf]
    %v323 = vld [vmem:[#allocation8 + $0x1c] sm:$0xf]
    %v324 = vld [vmem:[#allocation8 + $0x20] sm:$0xf]
    %v325 = vld [vmem:[#allocation8 + $0x24] sm:$0xf]
    %v326 = vld [vmem:[#allocation8 + $0x28] sm:$0xf]
    %v327 = vld [vmem:[#allocation8 + $0x2c] sm:$0xf]
    %v328 = vld [vmem:[#allocation8 + $0x30] sm:$0xf]
    %v329 = vld [vmem:[#allocation8 + $0x34] sm:$0xf]
    %v330 = vld [vmem:[#allocation8 + $0x38] sm:$0xf]
    %v331 = vld [vmem:[#allocation8 + $0x3c] sm:$0xf]
    %v332 = vld [vmem:[%s6] sm:$0x1]
    %v334 = vlaneseq
    %v335 = vshrl.u32 %v334, 7
    %v336 = vsub.s32 0, %v335
    %v337 = vrot.slane %v332, %v336
    %v355 = vunpack.c.l.b16 %v316
    %v356 = vunpack.c.l.b16 %v317
    %v357 = vunpack.c.l.b16 %v318
    %v358 = vunpack.c.l.b16 %v319
    %v359 = vunpack.c.l.b16 %v320
    %v360 = vunpack.c.l.b16 %v321
    %v361 = vunpack.c.l.b16 %v322
    %v362 = vunpack.c.l.b16 %v323
    %v363 = vunpack.c.l.b16 %v324
    %v364 = vunpack.c.l.b16 %v325
    %v365 = vunpack.c.l.b16 %v326
    %v366 = vunpack.c.l.b16 %v327
    %v367 = vunpack.c.l.b16 %v328
    %v368 = vunpack.c.l.b16 %v329
    %v369 = vunpack.c.l.b16 %v330
    %v370 = vunpack.c.l.b16 %v331
    %v371 = vpack.c.b16 %v356, %v355
    %v372 = vpack.c.b16 %v358, %v357
    %v373 = vpack.c.b16 %v360, %v359
    %v374 = vpack.c.b16 %v362, %v361
    %v375 = vpack.c.b16 %v364, %v363
    %v376 = vpack.c.b16 %v366, %v365
    %v377 = vpack.c.b16 %v368, %v367
    %v378 = vpack.c.b16 %v370, %v369
    %387 = vmatprep.subr.bf16.mxu0 0
    %388 = vmatpush1.bf16.msra.mxu0 %v371
    %389 = vmatprep.subr.bf16.mxu0 0
    %390 = vmatpush1.bf16.msra.mxu0 %v372
    %391 = vmatprep.subr.bf16.mxu0 0
    %392 = vmatpush1.bf16.msra.mxu0 %v373
    %393 = vmatprep.subr.bf16.mxu0 0
    %394 = vmatpush1.bf16.msra.mxu0 %v374
    %395 = vmatprep.subr.bf16.mxu0 0
    %396 = vmatpush1.bf16.msra.mxu0 %v375
    %397 = vmatprep.subr.bf16.mxu0 0
    %398 = vmatpush1.bf16.msra.mxu0 %v376
    %399 = vmatprep.subr.bf16.mxu0 0
    %400 = vmatpush1.bf16.msra.mxu0 %v377
    %401 = vmatprep.subr.bf16.mxu0 0
    %402 = vmatpush1.bf16.msra.mxu0 %v378
    %403 = vmatprep.subr.bf16.mxu0 0
    %404 = vmatpush1.bf16.msra.mxu0 0
    %405 = vmatprep.subr.bf16.mxu0 0
    %406 = vmatpush1.bf16.msra.mxu0 0
    %407 = vmatprep.subr.bf16.mxu0 0
    %408 = vmatpush1.bf16.msra.mxu0 0
    %409 = vmatprep.subr.bf16.mxu0 0
    %410 = vmatpush1.bf16.msra.mxu0 0
    %411 = vmatprep.subr.bf16.mxu0 0
    %412 = vmatpush1.bf16.msra.mxu0 0
    %413 = vmatprep.subr.bf16.mxu0 0
    %414 = vmatpush1.bf16.msra.mxu0 0
    %415 = vmatprep.subr.bf16.mxu0 0
    %416 = vmatpush1.bf16.msra.mxu0 0
    %417 = vmatprep.subr.bf16.mxu0 0
    %418 = vmatpush1.bf16.msra.mxu0 0
    %419 = vmatprep.mubr.bf16.mxu0 0
    %420 = vmatmul.mubr.bf16.gmra.mrb[0].mxu0 %v315
    %v421 = vpop.f32.mrb[0].mxu0
    %v422 = vadd.f32 %v337, %v421
    %v423 = vpop.f32.mrb[0].mxu0
    %v424 = vpop.f32.mrb[0].mxu0
    %v425 = vadd.f32 %v337, %v424
    %v426 = vpop.f32.mrb[0].mxu0
    %427 = vdwg.mxu0
    %428 = vst [vmem:[#allocation10] sm:$0xff] %v422
    %429 = vst [vmem:[#allocation10 + $0x8] sm:$0xff] %v425
    // Predicated region
    $region46: #{mlp_forward.1} parent=1 // pred_check
      _
    $region47: #{mlp_forward.1} parent=1 // pred_check_branch
      %431 = sbr.rel (0) target = $region49
    $region48: #{mlp_forward.1} parent=1 // pred_region
      %s433 = ssub.s32 256, 256
      %434 = vsyncadd [#allocation4], %s433
      %s435 = sshll.u32 [#allocation10], 4
      %s436 = int_to_ptr.vmem [resolvable:$true] %s435
      %441 = dma.vmem_to_hbm [thread:$0]  %s436, 256, %s7, [#allocation4], 128, 128, 8
    $region49: #{mlp_forward.1} parent=1 // pred_fallthru
      _
    // Predicated region
    $region50: #{mlp_forward.1} parent=1 // pred_check
      _
    $region51: #{mlp_forward.1} parent=1 // pred_check_branch
      %443 = sbr.rel (0) target = $region53
    $region52: #{mlp_forward.1} parent=1 // pred_region
      %444 = dma.done [#allocation4], 256
    $region53: #{mlp_forward.1} parent=1 // pred_fallthru
      _
    %445 = vsyncpa [#allocation3], 1
    %446 = vsyncpa [#allocation6], 1
    %447 = vsyncpa [#allocation9], 1
    %448 = vsyncpa [#allocation4], 1

</llo_original>
